<compile_context>
chip_gen: v6e
topology: v6e:2x2x1
jax: 0.10.0
libtpu: 0.0.40
codegen_flags: <defaults>
</compile_context>

<pallas_src>
import functools

import jax
import jax.numpy as jnp
from jax.experimental import pallas as pl
from jax.experimental.pallas import tpu as pltpu


def _build_gather_matrix(H, W, dyc, dxc, flip, cos_t, sin_t):
    """One-hot gather matrix G^T (HW, HW), bf16: out[:, o] = x[:, src(o)] or 0."""
    HW = H * W
    o = jnp.arange(HW, dtype=jnp.int32)
    i = o // W
    j = o % W

    # Invert the transforms in reverse order: flip -> rotation -> crop.
    # 1) RandomHorizontalFlip
    j1 = jnp.where(flip, (W - 1) - j, j)

    # 2) RandomRotation: nearest neighbor about the image center, fill=0.
    cy = jnp.float32((H - 1) / 2.0)
    cx = jnp.float32((W - 1) / 2.0)
    yi = i.astype(jnp.float32) - cy
    xj = j1.astype(jnp.float32) - cx
    fy = cos_t * yi + sin_t * xj + cy
    fx = -sin_t * yi + cos_t * xj + cx
    ri = jnp.floor(fy + 0.5).astype(jnp.int32)
    rj = jnp.floor(fx + 0.5).astype(jnp.int32)
    rot_ok = (ri >= 0) & (ri < H) & (rj >= 0) & (rj < W)

    # 3) RandomCrop with zero padding: cropped[i, j] = x[i + dy - pad, j + dx - pad]
    si = ri + dyc
    sj = rj + dxc
    crop_ok = (si >= 0) & (si < H) & (sj >= 0) & (sj < W)

    flat_src = jnp.where(rot_ok & crop_ok, si * W + sj, -1)        # (HW,)
    src = jnp.arange(HW, dtype=jnp.int32)[:, None]                 # (HW, 1)
    return (src == flat_src[None, :]).astype(jnp.bfloat16)         # (HW, HW)


def _gather_matmul_kernel(x_ref, gt_ref, o_ref, *, split_f32):
    """One lane-dense row tile of X against the resident one-hot G^T."""
    g = gt_ref[...]
    if split_f32:
        # f32 -> hi/lo bf16 split; two bf16 MXU matmuls accumulated in f32.
        xf = x_ref[...]
        hi = xf.astype(jnp.bfloat16)
        lo = (xf - hi.astype(jnp.float32)).astype(jnp.bfloat16)
        out = jnp.dot(hi, g, preferred_element_type=jnp.float32)
        out = out + jnp.dot(lo, g, preferred_element_type=jnp.float32)
    else:
        # bf16 stays bf16; uint8/int8 values 0..255 are exact in bf16.
        out = jnp.dot(x_ref[...].astype(jnp.bfloat16), g,
                      preferred_element_type=jnp.float32)
    o_ref[...] = out.astype(o_ref.dtype)


def post_tensor_transform(x, key, *, pad=2, max_rot_deg=10.0,
                          p_crop=0.8, p_rot=0.5, p_flip=0.5):
    """Forward pass of PostTensorTransform on an NCHW batch (cifar10 config).

    Mirrors ProbTransform(RandomCrop(H, W, padding=pad), p=0.8),
    ProbTransform(RandomRotation(max_rot_deg), p=0.5) and
    RandomHorizontalFlip(p=0.5); one random parameter set per call, applied to
    the whole batch (as torchvision does for a single batched tensor).
    """
    N, C, H, W = x.shape
    HW = H * W
    M = N * C
    k1, k2, k3, k4, k5, k6 = jax.random.split(key, 6)

    # ProbTransform(RandomCrop, p=0.8): pad by `pad`, crop H x W at (dy, dx).
    apply_crop = jax.random.uniform(k1) < p_crop
    dy = jax.random.randint(k2, (), 0, 2 * pad + 1)
    dx = jax.random.randint(k3, (), 0, 2 * pad + 1)
    dyc = jnp.where(apply_crop, dy - pad, 0).astype(jnp.int32)
    dxc = jnp.where(apply_crop, dx - pad, 0).astype(jnp.int32)

    # ProbTransform(RandomRotation, p=0.5)
    apply_rot = jax.random.uniform(k4) < p_rot
    theta = jax.random.uniform(k5, (), minval=-max_rot_deg, maxval=max_rot_deg)
    theta = theta * (jnp.pi / 180.0)
    cos_t = jnp.where(apply_rot, jnp.cos(theta), 1.0).astype(jnp.float32)
    sin_t = jnp.where(apply_rot, jnp.sin(theta), 0.0).astype(jnp.float32)

    # RandomHorizontalFlip(p=0.5)
    flip = jax.random.uniform(k6) < p_flip

    # One-hot G^T built in XLA (cheap), fed to the kernel as a resident input.
    gt = _build_gather_matrix(H, W, dyc, dxc, flip, cos_t, sin_t)

    split_f32 = (x.dtype == jnp.float32)
    itemsize = jnp.dtype(x.dtype).itemsize
    sub = max(8, 32 // itemsize)          # sublane packing multiple for x dtype

    # Balanced row tiles up to 512 rows (sublane multiple), minimal padding.
    m_pad = ((M + sub - 1) // sub) * sub
    n_tiles = pl.cdiv(m_pad, 512)
    tile_m = ((pl.cdiv(m_pad, n_tiles) + sub - 1) // sub) * sub
    m_pad = n_tiles * tile_m
    grid_m = n_tiles

    x2d = x.reshape(M, HW)
    if m_pad != M:
        x2d = jnp.pad(x2d, ((0, m_pad - M), (0, 0)))

    # VMEM budget: resident G^T (+buffering), double-buffered X/out tiles,
    # in-kernel bf16/f32 temporaries; capped at ~90% of real chip capacity.
    try:
        vmem_cap = int(pltpu.get_tpu_info().vmem_capacity_bytes)
    except Exception:  # conservative fallback (64 MiB = smallest known chip)
        vmem_cap = 64 * 1024 * 1024
    gt_bytes = 2 * HW * HW * 2
    io_bytes = 2 * 2 * tile_m * HW * itemsize
    tmp_bytes = tile_m * HW * ((4 + 2 + 2 + 4) if split_f32 else (2 + 4))
    needed = (gt_bytes + io_bytes + tmp_bytes) * 5 // 4
    vmem_limit = int(min(max(needed, 32 * 1024 * 1024), vmem_cap * 9 // 10))
    # TODO(synk): for HW >= ~4096 the resident (HW, HW) bf16 G^T no longer fits
    # v7x VMEM; that regime needs a K-chunked fused build+matmul instead.

    kernel = functools.partial(_gather_matmul_kernel, split_f32=split_f32)

    out2d = pl.pallas_call(
        kernel,
        out_shape=jax.ShapeDtypeStruct((m_pad, HW), x.dtype),
        grid=(grid_m,),
        in_specs=[
            pl.BlockSpec((tile_m, HW), lambda i: (i, 0)),   # X row tiles
            pl.BlockSpec((HW, HW), lambda i: (0, 0)),       # resident G^T
        ],
        out_specs=pl.BlockSpec((tile_m, HW), lambda i: (i, 0)),
        compiler_params=pltpu.CompilerParams(
            # No cross-step scratch state -> the row-tile axis is truly
            # parallel (v7x megacore shards it across both TensorCores).
            dimension_semantics=("parallel",),
            vmem_limit_bytes=vmem_limit,
        ),
    )(x2d, gt)

    return out2d[:M].reshape(N, C, H, W)


if __name__ == "__main__":
    key = jax.random.PRNGKey(0)
    kx, kt = jax.random.split(key)
    # small shapes: batch=2, channels=4, spatial=16x16 (cifar10-like config)
    x = jax.random.normal(kx, (2, 4, 16, 16), jnp.float32)
    y = post_tensor_transform(x, kt, pad=2, max_rot_deg=10.0)
    jax.block_until_ready(y)
    assert y.shape == x.shape and y.dtype == x.dtype
    print("KERNEL_OK")
</pallas_src>

<mosaic_0001>
module attributes {stable_mosaic.version = 11 : i64} {
  func.func @_gather_matmul_kernel(%arg0: i32, %arg1: memref<8x256xf32, #tpu.memory_space<vmem>>, %arg2: memref<256x256xbf16, #tpu.memory_space<vmem>>, %arg3: memref<8x256xf32, #tpu.memory_space<vmem>>) attributes {dimension_semantics = [#tpu.dimension_semantics<parallel>], iteration_bounds = array<i64: 1>, scalar_prefetch = 0 : i64, scratch_operands = 0 : i64, tpu.core_type = #tpu.core_type<tc>, window_params = [{transform_indices = @transform_0, window_bounds = array<i64: 8, 256>}, {pipeline_mode = #tpu.pipeline_mode<synchronous>, transform_indices = @transform_1, window_bounds = array<i64: 256, 256>}, {transform_indices = @transform_2, window_bounds = array<i64: 8, 256>}]} {
    %c0 = arith.constant 0 : index
    %c0_0 = arith.constant 0 : index
    %0 = vector.load %arg2[%c0, %c0_0] : memref<256x256xbf16, #tpu.memory_space<vmem>>, vector<256x256xbf16>
    %c0_1 = arith.constant 0 : index
    %c0_2 = arith.constant 0 : index
    %1 = vector.load %arg1[%c0_1, %c0_2] : memref<8x256xf32, #tpu.memory_space<vmem>>, vector<8x256xf32>
    %2 = arith.truncf %1 : vector<8x256xf32> to vector<8x256xbf16>
    %3 = arith.extf %2 : vector<8x256xbf16> to vector<8x256xf32>
    %4 = arith.subf %1, %3 : vector<8x256xf32>
    %5 = arith.truncf %4 : vector<8x256xf32> to vector<8x256xbf16>
    %cst = arith.constant dense<0.000000e+00> : vector<8x256xf32>
    %6 = tpu.matmul %2, %0, %cst {dimension_numbers = #tpu.dot_dimension_numbers<[1], [0], [0], [1], [0, 0, 1, 1], [], []>} : vector<8x256xbf16>, vector<256x256xbf16>, vector<8x256xf32> -> vector<8x256xf32>
    %cst_3 = arith.constant dense<0.000000e+00> : vector<8x256xf32>
    %7 = tpu.matmul %5, %0, %cst_3 {dimension_numbers = #tpu.dot_dimension_numbers<[1], [0], [0], [1], [0, 0, 1, 1], [], []>} : vector<8x256xbf16>, vector<256x256xbf16>, vector<8x256xf32> -> vector<8x256xf32>
    %8 = arith.addf %6, %7 : vector<8x256xf32>
    %c0_4 = arith.constant 0 : index
    %c0_5 = arith.constant 0 : index
    %9 = vector.load %arg3[%c0_4, %c0_5] : memref<8x256xf32, #tpu.memory_space<vmem>>, vector<8x256xf32>
    tpu.vector_store %arg3[%c0_4, %c0_5], %8 {strides = array<i32>} : memref<8x256xf32, #tpu.memory_space<vmem>>, vector<8x256xf32>,
    return
  }
  func.func @transform_0(%arg0: i32) -> (i32, i32) {
    %c0_i32 = arith.constant 0 : i32
    %c0_i32_0 = arith.constant 0 : i32
    return %arg0, %c0_i32 : i32, i32
  }
  func.func @transform_1(%arg0: i32) -> (i32, i32) {
    %c0_i32 = arith.constant 0 : i32
    %c0_i32_0 = arith.constant 0 : i32
    %c0_i32_1 = arith.constant 0 : i32
    return %c0_i32, %c0_i32_0 : i32, i32
  }
  func.func @transform_2(%arg0: i32) -> (i32, i32) {
    %c0_i32 = arith.constant 0 : i32
    %c0_i32_0 = arith.constant 0 : i32
    return %arg0, %c0_i32 : i32, i32
  }
}

</mosaic_0001>

<llo_original>
// kernel: tpu_custom_call.1
$region0: #{tpu_custom_call.1}
  #allocation0 [shape = 'u32[]', space=smem, size = 0x4, offset = 0x4, fixed_abs, tag = 'smem constant byte address 0x4 - core index']
  #allocation1 [shape = 'u32[144,128]{1,0:T(1,128)}', space=vmem, size = 0x12000, scoped, tag = 'internal scratch']
  %s0 = inlined_call_operand.hbm [shape: f32[8,256], index: 0, kind: input, shape index: {}]
  %s1 = inlined_call_operand.hbm [shape: bf16[256,256], index: 1, kind: input, shape index: {}]
  %s2 = inlined_call_operand.hbm [shape: f32[8,256], index: 2, kind: output, shape index: {}]
  %s3 = sld [smem:[#allocation0]]
  $region26: #{tpu_custom_call.1} parent=0
    _
  %s5 = ssub.s32 1, %s3
  %s6 = scalar_select 0, %s5, %s3
  $region1: #{tpu_custom_call.1} parent=0
    #allocation2 [shape = 'u8[8192]{0}', space=vmem, size = 0x2000, scoped, tag = 'input window, operand 0, single buffered']
    #allocation3 [shape = 's32[1]{0}', space=sflag, size = 0x4, scoped, tag = 'scoped memory for tpu_custom_call.1']
    #allocation4 [shape = 's32[1]{0}', space=sflag, size = 0x4, scoped, tag = 'scoped memory for tpu_custom_call.1']
    #allocation5 [shape = 'u8[131072]{0}', space=vmem, size = 0x20000, scoped, tag = 'input window, operand 1, single buffered']
    #allocation6 [shape = 's32[1]{0}', space=sflag, size = 0x4, scoped, tag = 'scoped memory for tpu_custom_call.1']
    #allocation7 [shape = 'u8[8192]{0}', space=vmem, size = 0x2000, scoped, tag = 'output window, operand 0, single buffered']
    %7 = vsyncpa [#allocation3], 0
    %8 = vsyncpa [#allocation6], 0
    %9 = vsyncpa [#allocation4], 0
    // Predicated region
    $region2: #{tpu_custom_call.1} parent=1 // pred_check
      _
    $region3: #{tpu_custom_call.1} parent=1 // pred_check_branch
      %11 = sbr.rel (0) target = $region5
    $region4: #{tpu_custom_call.1} parent=1 // pred_region
      %s13 = ssub.s32 256, 256
      %14 = vsyncadd [#allocation3], %s13
      %s16 = sshll.u32 [#allocation2], 4
      %s17 = int_to_ptr.vmem [resolvable:$true] %s16
      %19 = dma.hbm_to_vmem [thread:$0]  %s0, 256, %s17, [#allocation3]
    $region5: #{tpu_custom_call.1} parent=1 // pred_fallthru
      _
    // Predicated region
    $region6: #{tpu_custom_call.1} parent=1 // pred_check
      _
    $region7: #{tpu_custom_call.1} parent=1 // pred_check_branch
      %21 = sbr.rel (0) target = $region9
    $region8: #{tpu_custom_call.1} parent=1 // pred_region
      %s23 = ssub.s32 4096, 4096
      %24 = vsyncadd [#allocation6], %s23
      %s25 = sshll.u32 [#allocation5], 4
      %s26 = int_to_ptr.vmem [resolvable:$true] %s25
      %31 = dma.hbm_to_vmem [thread:$0]  %s1, 4096, %s26, [#allocation6], 128, 128, 8
    $region9: #{tpu_custom_call.1} parent=1 // pred_fallthru
      _
    // Predicated region
    $region10: #{tpu_custom_call.1} parent=1 // pred_check
      _
    $region11: #{tpu_custom_call.1} parent=1 // pred_check_branch
      %33 = sbr.rel (0) target = $region13
    $region12: #{tpu_custom_call.1} parent=1 // pred_region
      %34 = dma.done [#allocation3], 256
    $region13: #{tpu_custom_call.1} parent=1 // pred_fallthru
      _
    // Predicated region
    $region14: #{tpu_custom_call.1} parent=1 // pred_check
      _
    $region15: #{tpu_custom_call.1} parent=1 // pred_check_branch
      %36 = sbr.rel (0) target = $region17
    $region16: #{tpu_custom_call.1} parent=1 // pred_region
      %37 = dma.done [#allocation6], 4096
    $region17: #{tpu_custom_call.1} parent=1 // pred_fallthru
      _
    %v38 = vld [vmem:[#allocation5] sm:$0xff]
    %v39 = vld [vmem:[#allocation5 + $0x8] sm:$0xff]
    %v40 = vld [vmem:[#allocation5 + $0x10] sm:$0xff]
    %v41 = vld [vmem:[#allocation5 + $0x18] sm:$0xff]
    %v42 = vld [vmem:[#allocation5 + $0x20] sm:$0xff]
    %v43 = vld [vmem:[#allocation5 + $0x28] sm:$0xff]
    %v44 = vld [vmem:[#allocation5 + $0x30] sm:$0xff]
    %v45 = vld [vmem:[#allocation5 + $0x38] sm:$0xff]
    %v46 = vld [vmem:[#allocation5 + $0x40] sm:$0xff]
    %v47 = vld [vmem:[#allocation5 + $0x48] sm:$0xff]
    %v48 = vld [vmem:[#allocation5 + $0x50] sm:$0xff]
    %v49 = vld [vmem:[#allocation5 + $0x58] sm:$0xff]
    %v50 = vld [vmem:[#allocation5 + $0x60] sm:$0xff]
    %v51 = vld [vmem:[#allocation5 + $0x68] sm:$0xff]
    %v52 = vld [vmem:[#allocation5 + $0x70] sm:$0xff]
    %v53 = vld [vmem:[#allocation5 + $0x78] sm:$0xff]
    %v54 = vld [vmem:[#allocation5 + $0x80] sm:$0xff]
    %v55 = vld [vmem:[#allocation5 + $0x88] sm:$0xff]
    %v56 = vld [vmem:[#allocation5 + $0x90] sm:$0xff]
    %v57 = vld [vmem:[#allocation5 + $0x98] sm:$0xff]
    %v58 = vld [vmem:[#allocation5 + $0xa0] sm:$0xff]
    %v59 = vld [vmem:[#allocation5 + $0xa8] sm:$0xff]
    %v60 = vld [vmem:[#allocation5 + $0xb0] sm:$0xff]
    %v61 = vld [vmem:[#allocation5 + $0xb8] sm:$0xff]
    %v62 = vld [vmem:[#allocation5 + $0xc0] sm:$0xff]
    %v63 = vld [vmem:[#allocation5 + $0xc8] sm:$0xff]
    %v64 = vld [vmem:[#allocation5 + $0xd0] sm:$0xff]
    %v65 = vld [vmem:[#allocation5 + $0xd8] sm:$0xff]
    %v66 = vld [vmem:[#allocation5 + $0xe0] sm:$0xff]
    %v67 = vld [vmem:[#allocation5 + $0xe8] sm:$0xff]
    %v68 = vld [vmem:[#allocation5 + $0xf0] sm:$0xff]
    %v69 = vld [vmem:[#allocation5 + $0xf8] sm:$0xff]
    %v70 = vld [vmem:[#allocation2] sm:$0xff]
    %v71 = vld [vmem:[#allocation2 + $0x8] sm:$0xff]
    %v72 = vpack.c.bf16 %v70, %v70
    %v73 = vpack.c.bf16 %v71, %v71
    %v74 = vunpack.c.l.bf16 %v72
    %v75 = vunpack.c.l.bf16 %v73
    %v76 = vsub.f32 %v70, %v74
    %v77 = vsub.f32 %v71, %v75
    %v78 = vpack.c.bf16 %v76, %v76
    %v79 = vpack.c.bf16 %v77, %v77
    %v112 = vunpack.c.l.b16 %v38
    %v113 = vunpack.c.h.b16 %v38
    %v114 = vunpack.c.l.b16 %v39
    %v115 = vunpack.c.h.b16 %v39
    %v116 = vunpack.c.l.b16 %v40
    %v117 = vunpack.c.h.b16 %v40
    %v118 = vunpack.c.l.b16 %v41
    %v119 = vunpack.c.h.b16 %v41
    %v120 = vunpack.c.l.b16 %v42
    %v121 = vunpack.c.h.b16 %v42
    %v122 = vunpack.c.l.b16 %v43
    %v123 = vunpack.c.h.b16 %v43
    %v124 = vunpack.c.l.b16 %v44
    %v125 = vunpack.c.h.b16 %v44
    %v126 = vunpack.c.l.b16 %v45
    %v127 = vunpack.c.h.b16 %v45
    %v128 = vunpack.c.l.b16 %v46
    %v129 = vunpack.c.h.b16 %v46
    %v130 = vunpack.c.l.b16 %v47
    %v131 = vunpack.c.h.b16 %v47
    %v132 = vunpack.c.l.b16 %v48
    %v133 = vunpack.c.h.b16 %v48
    %v134 = vunpack.c.l.b16 %v49
    %v135 = vunpack.c.h.b16 %v49
    %v136 = vunpack.c.l.b16 %v50
    %v137 = vunpack.c.h.b16 %v50
    %v138 = vunpack.c.l.b16 %v51
    %v139 = vunpack.c.h.b16 %v51
    %v140 = vunpack.c.l.b16 %v52
    %v141 = vunpack.c.h.b16 %v52
    %v142 = vunpack.c.l.b16 %v53
    %v143 = vunpack.c.h.b16 %v53
    %v144 = vunpack.c.l.b16 %v54
    %v145 = vunpack.c.h.b16 %v54
    %v146 = vunpack.c.l.b16 %v55
    %v147 = vunpack.c.h.b16 %v55
    %v148 = vunpack.c.l.b16 %v56
    %v149 = vunpack.c.h.b16 %v56
    %v150 = vunpack.c.l.b16 %v57
    %v151 = vunpack.c.h.b16 %v57
    %v152 = vunpack.c.l.b16 %v58
    %v153 = vunpack.c.h.b16 %v58
    %v154 = vunpack.c.l.b16 %v59
    %v155 = vunpack.c.h.b16 %v59
    %v156 = vunpack.c.l.b16 %v60
    %v157 = vunpack.c.h.b16 %v60
    %v158 = vunpack.c.l.b16 %v61
    %v159 = vunpack.c.h.b16 %v61
    %v160 = vunpack.c.l.b16 %v62
    %v161 = vunpack.c.h.b16 %v62
    %v162 = vunpack.c.l.b16 %v63
    %v163 = vunpack.c.h.b16 %v63
    %v164 = vunpack.c.l.b16 %v64
    %v165 = vunpack.c.h.b16 %v64
    %v166 = vunpack.c.l.b16 %v65
    %v167 = vunpack.c.h.b16 %v65
    %v168 = vunpack.c.l.b16 %v66
    %v169 = vunpack.c.h.b16 %v66
    %v170 = vunpack.c.l.b16 %v67
    %v171 = vunpack.c.h.b16 %v67
    %v172 = vunpack.c.l.b16 %v68
    %v173 = vunpack.c.h.b16 %v68
    %v174 = vunpack.c.l.b16 %v69
    %v175 = vunpack.c.h.b16 %v69
    %v176 = vpack.c.b16 %v114, %v112
    %v177 = vpack.c.b16 %v115, %v113
    %v178 = vpack.c.b16 %v118, %v116
    %v179 = vpack.c.b16 %v119, %v117
    %v180 = vpack.c.b16 %v122, %v120
    %v181 = vpack.c.b16 %v123, %v121
    %v182 = vpack.c.b16 %v126, %v124
    %v183 = vpack.c.b16 %v127, %v125
    %v184 = vpack.c.b16 %v130, %v128
    %v185 = vpack.c.b16 %v131, %v129
    %v186 = vpack.c.b16 %v134, %v132
    %v187 = vpack.c.b16 %v135, %v133
    %v188 = vpack.c.b16 %v138, %v136
    %v189 = vpack.c.b16 %v139, %v137
    %v190 = vpack.c.b16 %v142, %v140
    %v191 = vpack.c.b16 %v143, %v141
    %v192 = vpack.c.b16 %v146, %v144
    %v193 = vpack.c.b16 %v147, %v145
    %v194 = vpack.c.b16 %v150, %v148
    %v195 = vpack.c.b16 %v151, %v149
    %v196 = vpack.c.b16 %v154, %v152
    %v197 = vpack.c.b16 %v155, %v153
    %v198 = vpack.c.b16 %v158, %v156
    %v199 = vpack.c.b16 %v159, %v157
    %v200 = vpack.c.b16 %v162, %v160
    %v201 = vpack.c.b16 %v163, %v161
    %v202 = vpack.c.b16 %v166, %v164
    %v203 = vpack.c.b16 %v167, %v165
    %v204 = vpack.c.b16 %v170, %v168
    %v205 = vpack.c.b16 %v171, %v169
    %v206 = vpack.c.b16 %v174, %v172
    %v207 = vpack.c.b16 %v175, %v173
    %240 = vmatprep.subr.bf16.mxu0 %v191
    %241 = vmatpush1.bf16.msra.mxu0 %v190
    %242 = vmatprep.subr.bf16.mxu0 %v189
    %243 = vmatpush1.bf16.msra.mxu0 %v188
    %244 = vmatprep.subr.bf16.mxu0 %v187
    %245 = vmatpush1.bf16.msra.mxu0 %v186
    %246 = vmatprep.subr.bf16.mxu0 %v185
    %247 = vmatpush1.bf16.msra.mxu0 %v184
    %248 = vmatprep.subr.bf16.mxu0 %v183
    %249 = vmatpush1.bf16.msra.mxu0 %v182
    %250 = vmatprep.subr.bf16.mxu0 %v181
    %251 = vmatpush1.bf16.msra.mxu0 %v180
    %252 = vmatprep.subr.bf16.mxu0 %v179
    %253 = vmatpush1.bf16.msra.mxu0 %v178
    %254 = vmatprep.subr.bf16.mxu0 %v177
    %255 = vmatpush1.bf16.msra.mxu0 %v176
    %256 = vmatprep.subr.bf16.mxu0 %v207
    %257 = vmatpush2.bf16.msra.mxu0 %v206
    %258 = vmatprep.subr.bf16.mxu0 %v205
    %259 = vmatpush2.bf16.msra.mxu0 %v204
    %260 = vmatprep.subr.bf16.mxu0 %v203
    %261 = vmatpush2.bf16.msra.mxu0 %v202
    %262 = vmatprep.subr.bf16.mxu0 %v201
    %263 = vmatpush2.bf16.msra.mxu0 %v200
    %264 = vmatprep.subr.bf16.mxu0 %v199
    %265 = vmatpush2.bf16.msra.mxu0 %v198
    %266 = vmatprep.subr.bf16.mxu0 %v197
    %267 = vmatpush2.bf16.msra.mxu0 %v196
    %268 = vmatprep.subr.bf16.mxu0 %v195
    %269 = vmatpush2.bf16.msra.mxu0 %v194
    %270 = vmatprep.subr.bf16.mxu0 %v193
    %271 = vmatpush2.bf16.msra.mxu0 %v192
    %272 = vmatprep.mubr.bf16.mxu0 %v79
    %273 = vmatmul.mubr.bf16.gmra.mxu0 %v78
    %v274 = vpop.f32.mrf.mxu0
    %v275 = vadd.f32 0.0, %v274
    %v276 = vpop.f32.mrf.mxu0
    %v277 = vadd.f32 0.0, %v276
    %v278 = vpop.f32.mrf.mxu0
    %v279 = vpop.f32.mrf.mxu0
    %280 = vdwg.mxu0
    %281 = vmatprep.subr.bf16.mxu0 %v191
    %282 = vmatpush1.bf16.msra.mxu0 %v190
    %283 = vmatprep.subr.bf16.mxu0 %v189
    %284 = vmatpush1.bf16.msra.mxu0 %v188
    %285 = vmatprep.subr.bf16.mxu0 %v187
    %286 = vmatpush1.bf16.msra.mxu0 %v186
    %287 = vmatprep.subr.bf16.mxu0 %v185
    %288 = vmatpush1.bf16.msra.mxu0 %v184
    %289 = vmatprep.subr.bf16.mxu0 %v183
    %290 = vmatpush1.bf16.msra.mxu0 %v182
    %291 = vmatprep.subr.bf16.mxu0 %v181
    %292 = vmatpush1.bf16.msra.mxu0 %v180
    %293 = vmatprep.subr.bf16.mxu0 %v179
    %294 = vmatpush1.bf16.msra.mxu0 %v178
    %295 = vmatprep.subr.bf16.mxu0 %v177
    %296 = vmatpush1.bf16.msra.mxu0 %v176
    %297 = vmatprep.subr.bf16.mxu0 %v207
    %298 = vmatpush2.bf16.msra.mxu0 %v206
    %299 = vmatprep.subr.bf16.mxu0 %v205
    %300 = vmatpush2.bf16.msra.mxu0 %v204
    %301 = vmatprep.subr.bf16.mxu0 %v203
    %302 = vmatpush2.bf16.msra.mxu0 %v202
    %303 = vmatprep.subr.bf16.mxu0 %v201
    %304 = vmatpush2.bf16.msra.mxu0 %v200
    %305 = vmatprep.subr.bf16.mxu0 %v199
    %306 = vmatpush2.bf16.msra.mxu0 %v198
    %307 = vmatprep.subr.bf16.mxu0 %v197
    %308 = vmatpush2.bf16.msra.mxu0 %v196
    %309 = vmatprep.subr.bf16.mxu0 %v195
    %310 = vmatpush2.bf16.msra.mxu0 %v194
    %311 = vmatprep.subr.bf16.mxu0 %v193
    %312 = vmatpush2.bf16.msra.mxu0 %v192
    %313 = vmatprep.mubr.bf16.mxu0 %v73
    %314 = vmatmul.mubr.bf16.gmra.mxu0 %v72
    %v315 = vpop.f32.mrf.mxu0
    %v316 = vadd.f32 %v275, %v315
    %v317 = vpop.f32.mrf.mxu0
    %v318 = vadd.f32 %v277, %v317
    %v319 = vpop.f32.mrf.mxu0
    %v320 = vpop.f32.mrf.mxu0
    %321 = vdwg.mxu0
    %322 = vst [vmem:[#allocation7] sm:$0xff] %v316
    %323 = vst [vmem:[#allocation7 + $0x8] sm:$0xff] %v318
    // Predicated region
    $region18: #{tpu_custom_call.1} parent=1 // pred_check
      _
    $region19: #{tpu_custom_call.1} parent=1 // pred_check_branch
      %325 = sbr.rel (0) target = $region21
    $region20: #{tpu_custom_call.1} parent=1 // pred_region
      %s327 = ssub.s32 256, 256
      %328 = vsyncadd [#allocation4], %s327
      %s330 = sshll.u32 [#allocation7], 4
      %s331 = int_to_ptr.vmem [resolvable:$true] %s330
      %333 = dma.vmem_to_hbm [thread:$0]  %s331, 256, %s2, [#allocation4]
    $region21: #{tpu_custom_call.1} parent=1 // pred_fallthru
      _
    // Predicated region
    $region22: #{tpu_custom_call.1} parent=1 // pred_check
      _
    $region23: #{tpu_custom_call.1} parent=1 // pred_check_branch
      %335 = sbr.rel (0) target = $region25
    $region24: #{tpu_custom_call.1} parent=1 // pred_region
      %336 = dma.done [#allocation4], 256
    $region25: #{tpu_custom_call.1} parent=1 // pred_fallthru
      _
    %337 = vsyncpa [#allocation3], 1
    %338 = vsyncpa [#allocation6], 1
    %339 = vsyncpa [#allocation4], 1

</llo_original>
